<compile_context>
chip_gen: v7x
topology: tpu7x:2x2x1
jax: 0.10.0
libtpu: 0.0.40
codegen_flags: <defaults>
</compile_context>

<pallas_src>
import functools

import jax
import jax.numpy as jnp
from jax import lax
from jax.experimental import pallas as pl
from jax.experimental.pallas import tpu as pltpu


def _gelu_exact(x):
    # torch.nn.functional.gelu(x, approximate='none') = 0.5*x*(1+erf(x/sqrt(2)))
    return 0.5 * x * (1.0 + lax.erf(x * (1.0 / jnp.sqrt(2.0).astype(x.dtype))))


def _round_up(a, b):
    return (a + b - 1) // b * b


def mptglu_kernel(x_ref, wgu_ref, bgu_ref, wd_ref, bd_ref, o_ref, acc_ref, *, th):
    """Grid = (M tiles, H tiles). H (reduction over ffn_hidden tiles) is last."""
    h = pl.program_id(1)

    @pl.when(h == 0)
    def _():
        acc_ref[...] = jnp.zeros_like(acc_ref)

    x = x_ref[...]                                   # (tm, D), compute dtype

    # Fused gate+up projection: one MXU pass over the interleaved [Wg_t | Wu_t]
    # tile, accumulated in f32.
    y = jnp.dot(x, wgu_ref[...], preferred_element_type=jnp.float32)   # (tm, 2*th)
    y = y + bgu_ref[...]                              # biases kept f32

    g = _gelu_exact(y[:, :th])                        # gate branch (f32)
    u = y[:, th:]                                     # up branch (f32)
    hval = g * u                                      # (tm, th) f32 epilogue

    # Partial down projection for this H tile, accumulated in f32 scratch.
    acc_ref[...] += jnp.dot(hval.astype(wd_ref.dtype), wd_ref[...],
                            preferred_element_type=jnp.float32)

    @pl.when(h == pl.num_programs(1) - 1)
    def _():
        o_ref[...] = (acc_ref[...] + bd_ref[...]).astype(o_ref.dtype)


def _pack_gate_up(wg, wu, bg, bu, th):
    """Interleave gate/up weights per H-tile so one (D, 2*th) block per grid
    step contains [Wg_tile | Wu_tile] (and likewise for the biases)."""
    D, H = wg.shape
    nh = H // th
    wgu = jnp.concatenate(
        [wg.reshape(D, nh, th), wu.reshape(D, nh, th)], axis=2).reshape(D, 2 * H)
    bgu = jnp.concatenate(
        [bg.reshape(1, nh, th), bu.reshape(1, nh, th)], axis=2).reshape(1, 2 * H)
    return wgu, bgu


def mptglu_forward(x, params, *, tm=256, th=None, compute_dtype=None,
                   vmem_limit_bytes=48 << 20):
    """x: (batch, seq, d_model). params: transposed (in, out) weights + biases.

    compute_dtype: dtype fed to the MXU (e.g. jnp.bfloat16 on v6e/v7x).
                   Accumulation / GELU / gating / bias adds stay in f32.
    """
    B, S, D = x.shape
    M = B * S
    H = params["wu"].shape[1]
    out_dtype = x.dtype
    cdt = compute_dtype if compute_dtype is not None else x.dtype

    # --- H (ffn_hidden) tile: largest lane-dense candidate that divides H. ---
    if th is None:
        th = next((c for c in (512, 256, 128) if H % c == 0), H)
    assert H % th == 0, "ffn_hidden tile must divide ffn_hidden"

    # --- M (row) tile: large MXU-friendly tile, padded tail instead of assert. ---
    tm = max(16, min(tm, _round_up(M, 16)))
    tm = _round_up(tm, 16)
    Mpad = _round_up(M, tm)

    x2 = x.reshape(M, D)
    if Mpad != M:
        x2 = jnp.pad(x2, ((0, Mpad - M), (0, 0)))
    x2 = x2.astype(cdt)

    wgu, bgu = _pack_gate_up(params["wg"], params["wu"],
                             params["bg"], params["bu"], th)
    wgu = wgu.astype(cdt)
    wd = params["wd"].astype(cdt)
    bgu = bgu.astype(jnp.float32)
    bd = params["bd"].astype(jnp.float32)

    grid = (Mpad // tm, H // th)

    out = pl.pallas_call(
        functools.partial(mptglu_kernel, th=th),
        out_shape=jax.ShapeDtypeStruct((Mpad, D), out_dtype),
        grid=grid,
        in_specs=[
            pl.BlockSpec((tm, D), lambda i, h: (i, 0)),        # x row tile
            pl.BlockSpec((D, 2 * th), lambda i, h: (0, h)),    # [Wg|Wu] H-tile
            pl.BlockSpec((1, 2 * th), lambda i, h: (0, h)),    # [bg|bu] H-tile
            pl.BlockSpec((th, D), lambda i, h: (h, 0)),        # Wd H-tile
            pl.BlockSpec((1, D), lambda i, h: (0, 0)),         # bd (resident)
        ],
        out_specs=pl.BlockSpec((tm, D), lambda i, h: (i, 0)),
        scratch_shapes=[pltpu.VMEM((tm, D), jnp.float32)],     # f32 accumulator
        compiler_params=pltpu.CompilerParams(
            dimension_semantics=("parallel", "arbitrary"),
            vmem_limit_bytes=vmem_limit_bytes),
    )(x2, wgu, bgu, wd, bd)

    return out[:M].reshape(B, S, D)


def mptglu_reference(x, params):
    """Pure-JAX (f32) reference matching the torch module."""
    g = _gelu_exact(x @ params["wg"] + params["bg"])
    u = x @ params["wu"] + params["bu"]
    return (g * u) @ params["wd"] + params["bd"]


def init_params(key, d_model, ffn_hidden):
    k1, k2, k3, k4, k5, k6 = jax.random.split(key, 6)
    scale_in = 1.0 / jnp.sqrt(d_model)
    scale_hid = 1.0 / jnp.sqrt(ffn_hidden)
    return {
        # stored as (in, out) so kernel does x @ W  (== torch x @ W_pt.T)
        "wg": jax.random.normal(k1, (d_model, ffn_hidden), jnp.float32) * scale_in,
        "bg": jax.random.normal(k2, (1, ffn_hidden), jnp.float32) * 0.02,
        "wu": jax.random.normal(k3, (d_model, ffn_hidden), jnp.float32) * scale_in,
        "bu": jax.random.normal(k4, (1, ffn_hidden), jnp.float32) * 0.02,
        "wd": jax.random.normal(k5, (ffn_hidden, d_model), jnp.float32) * scale_hid,
        "bd": jax.random.normal(k6, (1, d_model), jnp.float32) * 0.02,
    }


if __name__ == "__main__":
    key = jax.random.PRNGKey(0)

    # --- Config 1: MPT-like toy (d_model=32, expansion_ratio=4 -> H=128) ---
    batch, seq, d_model, expansion_ratio = 2, 8, 32, 4
    ffn_hidden = int(d_model * expansion_ratio)
    kx, kp, key = jax.random.split(key, 3)
    x = jax.random.normal(kx, (batch, seq, d_model), jnp.float32)
    params = init_params(kp, d_model, ffn_hidden)

    out = jax.block_until_ready(mptglu_forward(x, params))
    ref = mptglu_reference(x, params)
    assert out.shape == (batch, seq, d_model)
    assert jnp.allclose(out, ref, atol=1e-5, rtol=1e-5), "f32 mismatch vs reference"

    # bf16 MXU-input path (f32 accumulate) — looser tolerance vs f32 reference.
    out_bf16 = jax.block_until_ready(
        mptglu_forward(x, params, compute_dtype=jnp.bfloat16))
    assert jnp.allclose(out_bf16, ref, atol=5e-2, rtol=5e-2), "bf16 mismatch"

    # --- Config 2: exercises H-tiling accumulator (2 H steps) + M padding ---
    batch2, seq2, d_model2, ffn_hidden2 = 2, 5, 128, 256
    kx2, kp2 = jax.random.split(key)
    x2 = jax.random.normal(kx2, (batch2, seq2, d_model2), jnp.float32)
    params2 = init_params(kp2, d_model2, ffn_hidden2)

    out2 = jax.block_until_ready(mptglu_forward(x2, params2, th=128))
    ref2 = mptglu_reference(x2, params2)
    assert out2.shape == (batch2, seq2, d_model2)
    assert jnp.allclose(out2, ref2, atol=1e-5, rtol=1e-5), "H-tiled mismatch"

    print("KERNEL_OK")
</pallas_src>

<mosaic_0001>
module attributes {stable_mosaic.version = 11 : i64} {
  func.func @mptglu_kernel(%arg0: i32, %arg1: i32, %arg2: memref<16x32xf32, #tpu.memory_space<vmem>>, %arg3: memref<32x256xf32, #tpu.memory_space<vmem>>, %arg4: memref<1x256xf32, #tpu.memory_space<vmem>>, %arg5: memref<128x32xf32, #tpu.memory_space<vmem>>, %arg6: memref<1x32xf32, #tpu.memory_space<vmem>>, %arg7: memref<16x32xf32, #tpu.memory_space<vmem>>, %arg8: memref<16x32xf32, #tpu.memory_space<vmem>>) attributes {dimension_semantics = [#tpu.dimension_semantics<parallel>, #tpu.dimension_semantics<arbitrary>], iteration_bounds = array<i64: 1, 1>, scalar_prefetch = 0 : i64, scratch_operands = 1 : i64, tpu.core_type = #tpu.core_type<tc>, window_params = [{transform_indices = @transform_0, window_bounds = array<i64: 16, 32>}, {transform_indices = @transform_1, window_bounds = array<i64: 32, 256>}, {transform_indices = @transform_2, window_bounds = array<i64: 1, 256>}, {transform_indices = @transform_3, window_bounds = array<i64: 128, 32>}, {pipeline_mode = #tpu.pipeline_mode<synchronous>, transform_indices = @transform_4, window_bounds = array<i64: 1, 32>}, {transform_indices = @transform_5, window_bounds = array<i64: 16, 32>}]} {
    %c0_i32 = arith.constant 0 : i32
    %0 = arith.cmpi eq, %arg1, %c0_i32 : i32
    %1 = arith.extui %0 : i1 to i32
    %c0_i32_0 = arith.constant 0 : i32
    %2 = arith.cmpi ne, %1, %c0_i32_0 : i32
    scf.if %2 {
      %cst_19 = arith.constant 0.000000e+00 : f32
      %30 = vector.broadcast %cst_19 : f32 to vector<16x32xf32>
      %c0_20 = arith.constant 0 : index
      %c0_21 = arith.constant 0 : index
      %31 = vector.load %arg8[%c0_20, %c0_21] : memref<16x32xf32, #tpu.memory_space<vmem>>, vector<16x32xf32>
      tpu.vector_store %arg8[%c0_20, %c0_21], %30 {strides = array<i32>} : memref<16x32xf32, #tpu.memory_space<vmem>>, vector<16x32xf32>,
    } else {
    }
    %c0 = arith.constant 0 : index
    %c0_1 = arith.constant 0 : index
    %3 = vector.load %arg2[%c0, %c0_1] : memref<16x32xf32, #tpu.memory_space<vmem>>, vector<16x32xf32>
    %c0_2 = arith.constant 0 : index
    %c0_3 = arith.constant 0 : index
    %4 = vector.load %arg3[%c0_2, %c0_3] : memref<32x256xf32, #tpu.memory_space<vmem>>, vector<32x256xf32>
    %cst = arith.constant dense<0.000000e+00> : vector<16x256xf32>
    %5 = tpu.matmul %3, %4, %cst {dimension_numbers = #tpu.dot_dimension_numbers<[1], [0], [0], [1], [0, 0, 1, 1], [], []>} : vector<16x32xf32>, vector<32x256xf32>, vector<16x256xf32> -> vector<16x256xf32>
    %c0_4 = arith.constant 0 : index
    %c0_5 = arith.constant 0 : index
    %6 = vector.load %arg4[%c0_4, %c0_5] : memref<1x256xf32, #tpu.memory_space<vmem>>, vector<1x256xf32>
    %7 = vector.broadcast %6 : vector<1x256xf32> to vector<16x256xf32>
    %8 = arith.addf %5, %7 : vector<16x256xf32>
    %9 = vector.extract_strided_slice %8 {offsets = [0, 0], sizes = [16, 128], strides = [1, 1]} : vector<16x256xf32> to vector<16x128xf32>
    %cst_6 = arith.constant 5.000000e-01 : f32
    %10 = vector.broadcast %cst_6 : f32 to vector<16x128xf32>
    %11 = arith.mulf %10, %9 : vector<16x128xf32>
    %cst_7 = arith.constant 2.000000e+00 : f32
    %12 = math.sqrt %cst_7 : f32
    %cst_8 = arith.constant 1.000000e+00 : f32
    %13 = arith.divf %cst_8, %12 : f32
    %14 = vector.broadcast %13 : f32 to vector<16x128xf32>
    %15 = arith.mulf %9, %14 : vector<16x128xf32>
    %16 = math.erf %15 : vector<16x128xf32>
    %cst_9 = arith.constant 1.000000e+00 : f32
    %17 = vector.broadcast %cst_9 : f32 to vector<16x128xf32>
    %18 = arith.addf %17, %16 : vector<16x128xf32>
    %19 = arith.mulf %11, %18 : vector<16x128xf32>
    %20 = vector.extract_strided_slice %8 {offsets = [0, 128], sizes = [16, 128], strides = [1, 1]} : vector<16x256xf32> to vector<16x128xf32>
    %21 = arith.mulf %19, %20 : vector<16x128xf32>
    %c0_10 = arith.constant 0 : index
    %c0_11 = arith.constant 0 : index
    %22 = vector.load %arg8[%c0_10, %c0_11] : memref<16x32xf32, #tpu.memory_space<vmem>>, vector<16x32xf32>
    %c0_12 = arith.constant 0 : index
    %c0_13 = arith.constant 0 : index
    %23 = vector.load %arg5[%c0_12, %c0_13] : memref<128x32xf32, #tpu.memory_space<vmem>>, vector<128x32xf32>
    %cst_14 = arith.constant dense<0.000000e+00> : vector<16x32xf32>
    %24 = tpu.matmul %21, %23, %cst_14 {dimension_numbers = #tpu.dot_dimension_numbers<[1], [0], [0], [1], [0, 0, 1, 1], [], []>} : vector<16x128xf32>, vector<128x32xf32>, vector<16x32xf32> -> vector<16x32xf32>
    %25 = arith.addf %22, %24 : vector<16x32xf32>
    %c0_15 = arith.constant 0 : index
    %c0_16 = arith.constant 0 : index
    %26 = vector.load %arg8[%c0_15, %c0_16] : memref<16x32xf32, #tpu.memory_space<vmem>>, vector<16x32xf32>
    tpu.vector_store %arg8[%c0_15, %c0_16], %25 {strides = array<i32>} : memref<16x32xf32, #tpu.memory_space<vmem>>, vector<16x32xf32>,
    %c0_i32_17 = arith.constant 0 : i32
    %27 = arith.cmpi eq, %arg1, %c0_i32_17 : i32
    %28 = arith.extui %27 : i1 to i32
    %c0_i32_18 = arith.constant 0 : i32
    %29 = arith.cmpi ne, %28, %c0_i32_18 : i32
    scf.if %29 {
      %c0_19 = arith.constant 0 : index
      %c0_20 = arith.constant 0 : index
      %30 = vector.load %arg8[%c0_19, %c0_20] : memref<16x32xf32, #tpu.memory_space<vmem>>, vector<16x32xf32>
      %c0_21 = arith.constant 0 : index
      %c0_22 = arith.constant 0 : index
      %31 = vector.load %arg6[%c0_21, %c0_22] : memref<1x32xf32, #tpu.memory_space<vmem>>, vector<1x32xf32>
      %32 = vector.broadcast %31 : vector<1x32xf32> to vector<16x32xf32>
      %33 = arith.addf %30, %32 : vector<16x32xf32>
      %c0_23 = arith.constant 0 : index
      %c0_24 = arith.constant 0 : index
      %34 = vector.load %arg7[%c0_23, %c0_24] : memref<16x32xf32, #tpu.memory_space<vmem>>, vector<16x32xf32>
      tpu.vector_store %arg7[%c0_23, %c0_24], %33 {strides = array<i32>} : memref<16x32xf32, #tpu.memory_space<vmem>>, vector<16x32xf32>,
    } else {
    }
    return
  }
  func.func @transform_0(%arg0: i32, %arg1: i32) -> (i32, i32) {
    %c0_i32 = arith.constant 0 : i32
    %c0_i32_0 = arith.constant 0 : i32
    return %arg0, %c0_i32 : i32, i32
  }
  func.func @transform_1(%arg0: i32, %arg1: i32) -> (i32, i32) {
    %c0_i32 = arith.constant 0 : i32
    %c0_i32_0 = arith.constant 0 : i32
    return %c0_i32, %arg1 : i32, i32
  }
  func.func @transform_2(%arg0: i32, %arg1: i32) -> (i32, i32) {
    %c0_i32 = arith.constant 0 : i32
    %c0_i32_0 = arith.constant 0 : i32
    return %c0_i32, %arg1 : i32, i32
  }
  func.func @transform_3(%arg0: i32, %arg1: i32) -> (i32, i32) {
    %c0_i32 = arith.constant 0 : i32
    %c0_i32_0 = arith.constant 0 : i32
    return %arg1, %c0_i32 : i32, i32
  }
  func.func @transform_4(%arg0: i32, %arg1: i32) -> (i32, i32) {
    %c0_i32 = arith.constant 0 : i32
    %c0_i32_0 = arith.constant 0 : i32
    %c0_i32_1 = arith.constant 0 : i32
    return %c0_i32, %c0_i32_0 : i32, i32
  }
  func.func @transform_5(%arg0: i32, %arg1: i32) -> (i32, i32) {
    %c0_i32 = arith.constant 0 : i32
    %c0_i32_0 = arith.constant 0 : i32
    return %arg0, %c0_i32 : i32, i32
  }
}

</mosaic_0001>

<llo_original>
// kernel: tpu_custom_call.1
$region0: #{tpu_custom_call.1}
  #allocation0 [shape = 'u32[]', space=smem, size = 0x4, offset = 0x4, fixed_abs, tag = 'smem constant byte address 0x4 - core index']
  #allocation1 [shape = 'u32[144,128]{1,0:T(1,128)}', space=vmem, size = 0x12000, scoped, tag = 'internal scratch']
  #allocation2 [shape = 'f32[16,32]{1,0:T(8,128)}', space=vmem, size = 0x2000, scoped, tag = 'scratch operand']
  %s0 = inlined_call_operand.vmem [shape: f32[16,32], index: 0, kind: input, shape index: {}]
  %s1 = inlined_call_operand.vmem [shape: f32[32,256], index: 1, kind: input, shape index: {}]
  %s2 = inlined_call_operand.vmem [shape: f32[1,256], index: 2, kind: input, shape index: {}]
  %s3 = inlined_call_operand.vmem [shape: f32[128,32], index: 3, kind: input, shape index: {}]
  %s4 = inlined_call_operand.vmem [shape: f32[1,32], index: 4, kind: input, shape index: {}]
  %s5 = inlined_call_operand.hbm [shape: f32[16,32], index: 5, kind: output, shape index: {}]
  %s6 = sld [smem:[#allocation0]]
  $region38: #{tpu_custom_call.1} parent=0
    _
  %s8 = ssub.s32 1, %s6
  %s9 = scalar_select 0, %s8, %s6
  $region1: #{tpu_custom_call.1} parent=0
    #allocation3 [shape = 'u8[8192]{0}', space=vmem, size = 0x2000, scoped, tag = 'output window, operand 0, single buffered']
    #allocation4 [shape = 's32[1]{0}', space=sflag, size = 0x4, scoped, tag = 'scoped memory for tpu_custom_call.1']
    %10 = vsyncpa [#allocation4], 0
    // Predicated region
    $region2: #{tpu_custom_call.1} parent=1 // pred_check
      _
    $region3: #{tpu_custom_call.1} parent=1 // pred_check_branch
      %12 = sbr.rel (0) target = $region5
    $region4: #{tpu_custom_call.1} parent=1 // pred_region
      _
    $region5: #{tpu_custom_call.1} parent=1 // pred_fallthru
      _
    // Predicated region
    $region6: #{tpu_custom_call.1} parent=1 // pred_check
      _
    $region7: #{tpu_custom_call.1} parent=1 // pred_check_branch
      %14 = sbr.rel (0) target = $region9
    $region8: #{tpu_custom_call.1} parent=1 // pred_region
      _
    $region9: #{tpu_custom_call.1} parent=1 // pred_fallthru
      _
    // Predicated region
    $region10: #{tpu_custom_call.1} parent=1 // pred_check
      _
    $region11: #{tpu_custom_call.1} parent=1 // pred_check_branch
      %16 = sbr.rel (0) target = $region13
    $region12: #{tpu_custom_call.1} parent=1 // pred_region
      _
    $region13: #{tpu_custom_call.1} parent=1 // pred_fallthru
      _
    // Predicated region
    $region14: #{tpu_custom_call.1} parent=1 // pred_check
      _
    $region15: #{tpu_custom_call.1} parent=1 // pred_check_branch
      %18 = sbr.rel (0) target = $region17
    $region16: #{tpu_custom_call.1} parent=1 // pred_region
      _
    $region17: #{tpu_custom_call.1} parent=1 // pred_fallthru
      _
    // Predicated region
    $region18: #{tpu_custom_call.1} parent=1 // pred_check
      _
    $region19: #{tpu_custom_call.1} parent=1 // pred_check_branch
      %20 = sbr.rel (0) target = $region21
    $region20: #{tpu_custom_call.1} parent=1 // pred_region
      _
    $region21: #{tpu_custom_call.1} parent=1 // pred_fallthru
      _
    %p21 = scmp.eq.s32.totalorder 0, 0
    // Predicated region
    $region22: #{tpu_custom_call.1} parent=1 // pred_check
      %p22 = pneg %p21
    $region23: #{tpu_custom_call.1} parent=1 // pred_check_branch
      %24 = sbr.rel (%p22) target = $region25
    $region24: #{tpu_custom_call.1} parent=1 // pred_region
      %vm25 = vcmask 261120
      %26 = vst.msk [vmem:[#allocation2] sm:$0xff] %vm25, 0.0
      %27 = vst.msk [vmem:[#allocation2 + $0x8] sm:$0xff] %vm25, 0.0
    $region25: #{tpu_custom_call.1} parent=1 // pred_fallthru
      _
    %v28 = vld [vmem:[%s0] sm:$0xff]
    %v29 = vld [vmem:[%s0 + $0x8] sm:$0xff]
    %v30 = vld [vmem:[%s1] sm:$0xff]
    %v31 = vld [vmem:[%s1 + $0x8] sm:$0xff]
    %v32 = vld [vmem:[%s1 + $0x10] sm:$0xff]
    %v33 = vld [vmem:[%s1 + $0x18] sm:$0xff]
    %v34 = vld [vmem:[%s1 + $0x20] sm:$0xff]
    %v35 = vld [vmem:[%s1 + $0x28] sm:$0xff]
    %v36 = vld [vmem:[%s1 + $0x30] sm:$0xff]
    %v37 = vld [vmem:[%s1 + $0x38] sm:$0xff]
    %v38 = vld [vmem:[%s2] sm:$0x3]
    %v40 = vlaneseq
    %v41 = vshrl.u32 %v40, 7
    %v42 = vsub.s32 0, %v41
    %v43 = vrot.slane %v38, %v42
    %v44 = vlaneseq
    %v45 = vshrl.u32 %v44, 7
    %v46 = vsub.s32 1, %v45
    %v47 = vrot.slane %v38, %v46
    %vm50 = vcmask 261120
    %v52 = vsel %vm50, %v28, 0
    %v55 = vsel %vm50, %v29, 0
    %57 = vmatprep.subr.mxu0 %v31
    %58 = vmatpush1.msra.mxu0 %v30
    %59 = vmatprep.subr.mxu0 %v33
    %60 = vmatpush1.msra.mxu0 %v32
    %61 = vmatprep.subr.mxu0 %v35
    %62 = vmatpush1.msra.mxu0 %v34
    %63 = vmatprep.subr.mxu0 %v37
    %64 = vmatpush1.msra.mxu0 %v36
    %65 = vmatprep.subr.mxu0 0.0
    %66 = vmatpush1.msra.mxu0 0.0
    %67 = vmatprep.subr.mxu0 0.0
    %68 = vmatpush1.msra.mxu0 0.0
    %69 = vmatprep.subr.mxu0 0.0
    %70 = vmatpush1.msra.mxu0 0.0
    %71 = vmatprep.subr.mxu0 0.0
    %72 = vmatpush1.msra.mxu0 0.0
    %73 = vmatprep.subr.mxu0 0.0
    %74 = vmatpush1.msra.mxu0 0.0
    %75 = vmatprep.subr.mxu0 0.0
    %76 = vmatpush1.msra.mxu0 0.0
    %77 = vmatprep.subr.mxu0 0.0
    %78 = vmatpush1.msra.mxu0 0.0
    %79 = vmatprep.subr.mxu0 0.0
    %80 = vmatpush1.msra.mxu0 0.0
    %81 = vmatprep.subr.mxu0 0.0
    %82 = vmatpush1.msra.mxu0 0.0
    %83 = vmatprep.subr.mxu0 0.0
    %84 = vmatpush1.msra.mxu0 0.0
    %85 = vmatprep.subr.mxu0 0.0
    %86 = vmatpush1.msra.mxu0 0.0
    %87 = vmatprep.subr.mxu0 0.0
    %88 = vmatpush1.msra.mxu0 0.0
    %89 = vmatprep.subr.mxu0 0.0
    %90 = vmatpush1.msra.mxu0 0.0
    %91 = vmatprep.subr.mxu0 0.0
    %92 = vmatpush1.msra.mxu0 0.0
    %93 = vmatprep.subr.mxu0 0.0
    %94 = vmatpush1.msra.mxu0 0.0
    %95 = vmatprep.subr.mxu0 0.0
    %96 = vmatpush1.msra.mxu0 0.0
    %97 = vmatprep.subr.mxu0 0.0
    %98 = vmatpush1.msra.mxu0 0.0
    %99 = vmatprep.subr.mxu0 0.0
    %100 = vmatpush1.msra.mxu0 0.0
    %101 = vmatprep.subr.mxu0 0.0
    %102 = vmatpush1.msra.mxu0 0.0
    %103 = vmatprep.subr.mxu0 0.0
    %104 = vmatpush1.msra.mxu0 0.0
    %105 = vmatprep.subr.mxu0 0.0
    %106 = vmatpush1.msra.mxu0 0.0
    %107 = vmatprep.subr.mxu0 0.0
    %108 = vmatpush1.msra.mxu0 0.0
    %109 = vmatprep.subr.mxu0 0.0
    %110 = vmatpush1.msra.mxu0 0.0
    %111 = vmatprep.subr.mxu0 0.0
    %112 = vmatpush1.msra.mxu0 0.0
    %113 = vmatprep.subr.mxu0 0.0
    %114 = vmatpush1.msra.mxu0 0.0
    %115 = vmatprep.subr.mxu0 0.0
    %116 = vmatpush1.msra.mxu0 0.0
    %117 = vmatprep.subr.mxu0 0.0
    %118 = vmatpush1.msra.mxu0 0.0
    %119 = vmatprep.subr.mxu0 0.0
    %120 = vmatpush1.msra.mxu0 0.0
    %121 = vmatprep.mubr.f32.mxu0 0.0
    %122 = vmatmul.mubr.f32.gmra.mrb[0].mxu0 %v52
    %v123 = vpop.f32.mrb[0].mxu0
    %v124 = vadd.f32 %v43, %v123
    %v125 = vpop.f32.mrb[0].mxu0
    %v126 = vadd.f32 %v47, %v125
    %127 = vmatprep.mubr.f32.mxu0 0.0
    %128 = vmatmul.mubr.f32.gmra.mrb[0].mxu0 %v55
    %v129 = vpop.f32.mrb[0].mxu0
    %v130 = vadd.f32 %v43, %v129
    %v131 = vpop.f32.mrb[0].mxu0
    %v132 = vadd.f32 %v47, %v131
    %133 = vdwg.mxu0
    %v134 = vmul.f32 %v124, 0.5
    %v135 = vmul.f32 %v130, 0.5
    %v136 = vmul.f32 %v124, 0.70710677
    %v137 = vmul.f32 %v130, 0.70710677
    %v138 = verf.f32.pop %v136
    %v139 = verf.f32.pop %v137
    %v140 = vadd.f32 %v138, 1.0
    %v141 = vadd.f32 %v139, 1.0
    %v142 = vmul.f32 %v134, %v140
    %v143 = vmul.f32 %v135, %v141
    %v144 = vmul.f32 %v142, %v126
    %v145 = vmul.f32 %v143, %v132
    %v146 = vld [vmem:[#allocation2] sm:$0xff]
    %v147 = vld [vmem:[#allocation2 + $0x8] sm:$0xff]
    %v148 = vld [vmem:[%s3] sm:$0xff]
    %v149 = vld [vmem:[%s3 + $0x8] sm:$0xff]
    %v150 = vld [vmem:[%s3 + $0x10] sm:$0xff]
    %v151 = vld [vmem:[%s3 + $0x18] sm:$0xff]
    %v152 = vld [vmem:[%s3 + $0x20] sm:$0xff]
    %v153 = vld [vmem:[%s3 + $0x28] sm:$0xff]
    %v154 = vld [vmem:[%s3 + $0x30] sm:$0xff]
    %v155 = vld [vmem:[%s3 + $0x38] sm:$0xff]
    %v156 = vld [vmem:[%s3 + $0x40] sm:$0xff]
    %v157 = vld [vmem:[%s3 + $0x48] sm:$0xff]
    %v158 = vld [vmem:[%s3 + $0x50] sm:$0xff]
    %v159 = vld [vmem:[%s3 + $0x58] sm:$0xff]
    %v160 = vld [vmem:[%s3 + $0x60] sm:$0xff]
    %v161 = vld [vmem:[%s3 + $0x68] sm:$0xff]
    %v162 = vld [vmem:[%s3 + $0x70] sm:$0xff]
    %v163 = vld [vmem:[%s3 + $0x78] sm:$0xff]
    %164 = vmatprep.subr.mxu0 0.0
    %165 = vmatpush1.msra.mxu0 %v148
    %166 = vmatprep.subr.mxu0 0.0
    %167 = vmatpush1.msra.mxu0 %v149
    %168 = vmatprep.subr.mxu0 0.0
    %169 = vmatpush1.msra.mxu0 %v150
    %170 = vmatprep.subr.mxu0 0.0
    %171 = vmatpush1.msra.mxu0 %v151
    %172 = vmatprep.subr.mxu0 0.0
    %173 = vmatpush1.msra.mxu0 %v152
    %174 = vmatprep.subr.mxu0 0.0
    %175 = vmatpush1.msra.mxu0 %v153
    %176 = vmatprep.subr.mxu0 0.0
    %177 = vmatpush1.msra.mxu0 %v154
    %178 = vmatprep.subr.mxu0 0.0
    %179 = vmatpush1.msra.mxu0 %v155
    %180 = vmatprep.subr.mxu0 0.0
    %181 = vmatpush1.msra.mxu0 %v156
    %182 = vmatprep.subr.mxu0 0.0
    %183 = vmatpush1.msra.mxu0 %v157
    %184 = vmatprep.subr.mxu0 0.0
    %185 = vmatpush1.msra.mxu0 %v158
    %186 = vmatprep.subr.mxu0 0.0
    %187 = vmatpush1.msra.mxu0 %v159
    %188 = vmatprep.subr.mxu0 0.0
    %189 = vmatpush1.msra.mxu0 %v160
    %190 = vmatprep.subr.mxu0 0.0
    %191 = vmatpush1.msra.mxu0 %v161
    %192 = vmatprep.subr.mxu0 0.0
    %193 = vmatpush1.msra.mxu0 %v162
    %194 = vmatprep.subr.mxu0 0.0
    %195 = vmatpush1.msra.mxu0 %v163
    %196 = vmatprep.subr.mxu0 0.0
    %197 = vmatpush1.msra.mxu0 0.0
    %198 = vmatprep.subr.mxu0 0.0
    %199 = vmatpush1.msra.mxu0 0.0
    %200 = vmatprep.subr.mxu0 0.0
    %201 = vmatpush1.msra.mxu0 0.0
    %202 = vmatprep.subr.mxu0 0.0
    %203 = vmatpush1.msra.mxu0 0.0
    %204 = vmatprep.subr.mxu0 0.0
    %205 = vmatpush1.msra.mxu0 0.0
    %206 = vmatprep.subr.mxu0 0.0
    %207 = vmatpush1.msra.mxu0 0.0
    %208 = vmatprep.subr.mxu0 0.0
    %209 = vmatpush1.msra.mxu0 0.0
    %210 = vmatprep.subr.mxu0 0.0
    %211 = vmatpush1.msra.mxu0 0.0
    %212 = vmatprep.subr.mxu0 0.0
    %213 = vmatpush1.msra.mxu0 0.0
    %214 = vmatprep.subr.mxu0 0.0
    %215 = vmatpush1.msra.mxu0 0.0
    %216 = vmatprep.subr.mxu0 0.0
    %217 = vmatpush1.msra.mxu0 0.0
    %218 = vmatprep.subr.mxu0 0.0
    %219 = vmatpush1.msra.mxu0 0.0
    %220 = vmatprep.subr.mxu0 0.0
    %221 = vmatpush1.msra.mxu0 0.0
    %222 = vmatprep.subr.mxu0 0.0
    %223 = vmatpush1.msra.mxu0 0.0
    %224 = vmatprep.subr.mxu0 0.0
    %225 = vmatpush1.msra.mxu0 0.0
    %226 = vmatprep.subr.mxu0 0.0
    %227 = vmatpush1.msra.mxu0 0.0
    %228 = vmatprep.mubr.f32.mxu0 0.0
    %229 = vmatmul.mubr.f32.gmra.mrb[0].mxu0 %v144
    %v230 = vpop.f32.mrb[0].mxu0
    %v231 = vadd.f32 0.0, %v230
    %v232 = vpop.f32.mrb[0].mxu0
    %233 = vmatprep.mubr.f32.mxu0 0.0
    %234 = vmatmul.mubr.f32.gmra.mrb[0].mxu0 %v145
    %v235 = vpop.f32.mrb[0].mxu0
    %v236 = vadd.f32 0.0, %v235
    %v237 = vpop.f32.mrb[0].mxu0
    %238 = vdwg.mxu0
    %v239 = vadd.f32 %v146, %v231
    %v240 = vadd.f32 %v147, %v236
    %241 = vst.msk [vmem:[#allocation2] sm:$0xff] %vm50, %v239
    %242 = vst.msk [vmem:[#allocation2 + $0x8] sm:$0xff] %vm50, %v240
    // Predicated region
    $region26: #{tpu_custom_call.1} parent=1 // pred_check
      %p243 = pneg %p21
    $region27: #{tpu_custom_call.1} parent=1 // pred_check_branch
      %245 = sbr.rel (%p243) target = $region29
    $region28: #{tpu_custom_call.1} parent=1 // pred_region
      %v246 = vld [vmem:[#allocation2] sm:$0xff]
      %v247 = vld [vmem:[#allocation2 + $0x8] sm:$0xff]
      %v248 = vld [vmem:[%s4] sm:$0x1]
      %v250 = vlaneseq
      %v251 = vshrl.u32 %v250, 7
      %v252 = vsub.s32 0, %v251
      %v253 = vrot.slane %v248, %v252
      %v255 = vadd.f32 %v246, %v253
      %v256 = vadd.f32 %v247, %v253
      %257 = vst.msk [vmem:[#allocation3] sm:$0xff] %vm50, %v255
      %258 = vst.msk [vmem:[#allocation3 + $0x8] sm:$0xff] %vm50, %v256
    $region29: #{tpu_custom_call.1} parent=1 // pred_fallthru
      _
    // Predicated region
    $region30: #{tpu_custom_call.1} parent=1 // pred_check
      _
    $region31: #{tpu_custom_call.1} parent=1 // pred_check_branch
      %260 = sbr.rel (0) target = $region33
    $region32: #{tpu_custom_call.1} parent=1 // pred_region
      %s262 = ssub.s32 256, 256
      %263 = vsyncadd [#allocation4], %s262
      %s264 = sshll.u32 [#allocation3], 4
      %s265 = int_to_ptr.vmem [resolvable:$true] %s264
      %270 = dma.vmem_to_hbm [thread:$0]  %s265, 256, %s5, [#allocation4], 128, 128, 8
    $region33: #{tpu_custom_call.1} parent=1 // pred_fallthru
      _
    // Predicated region
    $region34: #{tpu_custom_call.1} parent=1 // pred_check
      _
    $region35: #{tpu_custom_call.1} parent=1 // pred_check_branch
      %272 = sbr.rel (0) target = $region37
    $region36: #{tpu_custom_call.1} parent=1 // pred_region
      %273 = dma.done [#allocation4], 256
    $region37: #{tpu_custom_call.1} parent=1 // pred_fallthru
      _
    %274 = vsyncpa [#allocation4], 1

</llo_original>
